<compile_context>
chip_gen: v6e
topology: v6e:2x2x1
jax: 0.10.0
libtpu: 0.0.40
codegen_flags: <defaults>
</compile_context>

<pallas_src>
from functools import partial

import jax
import jax.numpy as jnp
from jax.experimental import pallas as pl
from jax.experimental.pallas import tpu as pltpu


def _elu(x):
    # ELU(alpha=1): x if x > 0 else exp(x) - 1.  exp goes to the EUP slot;
    # the not-taken branch (exp of a large positive) is inf, never NaN, and is
    # selected away by the where.
    return jnp.where(x > 0.0, x, jnp.exp(x) - 1.0)


def _round_up(x, m):
    return ((x + m - 1) // m) * m


def reward_mlp_kernel(obs_ref, act_ref,
                      w0a_ref, w0b_ref, b0_ref,
                      w1_ref, b1_ref,
                      w2_ref, b2_ref,
                      w3_ref, b3_ref,
                      o_ref, *, compute_dtype):
    """One batch tile, feature-major: activations are (features, TB).

    Layer 0 fuses torch's concat([obs, act]) by splitting W0 column-wise.
    All weights are torch-native (out, in); biases are (out, 1) columns.
    The final (1, h2) @ (h2, TB) matmul lands directly in the lane-dense
    (1, TB) output row (no masked partial stores).
    """
    cd = compute_dtype

    h = (jnp.dot(w0a_ref[...], obs_ref[...].astype(cd),
                 preferred_element_type=jnp.float32)
         + jnp.dot(w0b_ref[...], act_ref[...].astype(cd),
                   preferred_element_type=jnp.float32)
         + b0_ref[...])
    h = _elu(h)

    h = jnp.dot(w1_ref[...], h.astype(cd),
                preferred_element_type=jnp.float32) + b1_ref[...]
    h = _elu(h)

    h = jnp.dot(w2_ref[...], h.astype(cd),
                preferred_element_type=jnp.float32) + b2_ref[...]
    h = _elu(h)

    out = jnp.dot(w3_ref[...], h.astype(cd),
                  preferred_element_type=jnp.float32) + b3_ref[...]
    o_ref[...] = out.astype(o_ref.dtype)


def _batch_axis_semantics(num_tiles):
    # v7x has two TensorCores per chip: CORE_PARALLEL shards the batch-tile
    # grid axis across them.  On v5e/v6e (single TC) use plain PARALLEL.
    try:
        kind = jax.devices()[0].device_kind.lower()
    except Exception:
        kind = ""
    if "v7" in kind and num_tiles > 1:
        return (pltpu.CORE_PARALLEL,)
    return (pltpu.PARALLEL,)


def reward_model_get_reward(observations, actions, params, *,
                            tile_b=4096, compute_dtype=jnp.float32,
                            features_major=False):
    """Equivalent of RewardModel.get_reward(observations, actions) -> (B,).

    params: [(w0, b0), ..., (w3, b3)] with torch-native shapes
            w_i: (fan_out, fan_in), b_i: (fan_out, 1).

    features_major=True means observations/actions are already (num_obs, B) /
    (num_actions, B) — the preferred, bandwidth-optimal HBM layout.  With the
    default batch-major (B, F) module contract the wrapper transposes once.
    """
    (w0, b0), (w1, b1), (w2, b2), (w3, b3) = params

    if features_major:
        num_obs, B = observations.shape
        num_actions = actions.shape[0]
        obs_t, act_t = observations, actions
    else:
        B, num_obs = observations.shape
        num_actions = actions.shape[-1]
        # Fallback path: one transpose pass in XLA.  Prefer producing
        # feature-major inputs upstream to avoid it entirely.
        obs_t, act_t = observations.T, actions.T

    # Split the layer-0 weight column-wise so the concat is fused in-kernel.
    w0a, w0b = w0[:, :num_obs], w0[:, num_obs:]

    if compute_dtype != jnp.float32:
        # Narrow the MXU operands AND the input HBM traffic (cast before the
        # DMA); accumulation, biases and ELU stay f32.
        obs_t = obs_t.astype(compute_dtype)
        act_t = act_t.astype(compute_dtype)
        w0a, w0b, w1, w2, w3 = (w.astype(compute_dtype)
                                for w in (w0a, w0b, w1, w2, w3))

    # Batch tiling along the lane axis.  No input padding pass: Pallas masks
    # the ragged tail block (garbage tail columns are column-independent and
    # never written back).  Per-tile VMEM footprint is tiny (<~3 MiB even at
    # TB=8192), well within every generation's scoped-VMEM default.
    TB = min(_round_up(tile_b, 128), _round_up(B, 128))
    num_tiles = pl.cdiv(B, TB)

    def cols(f):        # batch-tiled feature-major activations / output
        return pl.BlockSpec((f, TB), lambda i: (0, i))

    def resident(arr):  # weights/biases: same block every step -> VMEM-resident
        return pl.BlockSpec(arr.shape, lambda i: (0, 0))

    h0, h1, h2 = w0.shape[0], w1.shape[0], w2.shape[0]
    in_bytes = int(obs_t.size * obs_t.dtype.itemsize
                   + act_t.size * act_t.dtype.itemsize)
    w_bytes = int(sum(int(a.size) * a.dtype.itemsize
                      for a in (w0a, w0b, b0, w1, b1, w2, b2, w3, b3)))
    cost = pl.CostEstimate(
        flops=int(2 * B * ((num_obs + num_actions) * h0 + h0 * h1 + h1 * h2 + h2)),
        transcendentals=int(B * (h0 + h1 + h2)),
        bytes_accessed=in_bytes + w_bytes + int(B) * 4)

    out = pl.pallas_call(
        partial(reward_mlp_kernel, compute_dtype=compute_dtype),
        out_shape=jax.ShapeDtypeStruct((1, B), jnp.float32),
        grid=(num_tiles,),
        in_specs=[
            cols(num_obs), cols(num_actions),
            resident(w0a), resident(w0b), resident(b0),
            resident(w1), resident(b1),
            resident(w2), resident(b2),
            resident(w3), resident(b3),
        ],
        out_specs=pl.BlockSpec((1, TB), lambda i: (0, i)),
        compiler_params=pltpu.CompilerParams(
            dimension_semantics=_batch_axis_semantics(num_tiles)),
        cost_estimate=cost,
    )(obs_t, act_t, w0a, w0b, b0, w1, b1, w2, b2, w3, b3)

    # torch.squeeze(dim=-1): (1, B) lane-dense row -> (B,)
    return out[0, :]


def init_params(key, num_obs, num_actions, hidden_dims):
    """Deterministic synthetic weights (normal * 0.1); torch-native nn.Linear
    shapes: w: (fan_out, fan_in), b: (fan_out, 1)."""
    dims = [num_obs + num_actions] + list(hidden_dims) + [1]
    params = []
    for i in range(len(dims) - 1):
        key, kw, kb = jax.random.split(key, 3)
        w = jax.random.normal(kw, (dims[i + 1], dims[i]), dtype=jnp.float32) * 0.1
        b = jax.random.normal(kb, (dims[i + 1], 1), dtype=jnp.float32) * 0.1
        params.append((w, b))
    return params


def reference_forward(observations, actions, params):
    """Pure-JAX reference (batch-major inputs, torch-native weights)."""
    x = jnp.concatenate([observations, actions], axis=-1)
    (w0, b0), (w1, b1), (w2, b2), (w3, b3) = params
    h = _elu(x @ w0.T + b0.T)
    h = _elu(h @ w1.T + b1.T)
    h = _elu(h @ w2.T + b2.T)
    out = h @ w3.T + b3.T
    return jnp.squeeze(out, axis=-1)


if __name__ == "__main__":
    key = jax.random.PRNGKey(0)
    k_obs, k_act, k_par, k_obs2, k_act2 = jax.random.split(key, 5)

    num_obs, num_actions = 20, 12
    hidden_dims = [32, 32, 32]
    params = init_params(k_par, num_obs, num_actions, hidden_dims)

    # 1) Small smoke test, module-native batch-major inputs (single tile).
    batch = 8
    observations = jax.random.normal(k_obs, (batch, num_obs), dtype=jnp.float32)
    actions = jax.random.normal(k_act, (batch, num_actions), dtype=jnp.float32)
    reward = jax.block_until_ready(
        reward_model_get_reward(observations, actions, params))
    ref = reference_forward(observations, actions, params)
    assert reward.shape == (batch,)
    assert jnp.allclose(reward, ref, rtol=1e-4, atol=1e-5), \
        float(jnp.max(jnp.abs(reward - ref)))

    # 2) Multi-tile ragged batch via the preferred feature-major fast path:
    #    exercises pipelined tiles, the masked tail block (no wrapper pad) and
    #    VMEM-resident weights across grid steps.
    batch2 = 300
    obs2 = jax.random.normal(k_obs2, (batch2, num_obs), dtype=jnp.float32)
    act2 = jax.random.normal(k_act2, (batch2, num_actions), dtype=jnp.float32)
    reward2 = jax.block_until_ready(
        reward_model_get_reward(obs2.T, act2.T, params,
                                tile_b=128, features_major=True))
    ref2 = reference_forward(obs2, act2, params)
    assert reward2.shape == (batch2,)
    assert jnp.allclose(reward2, ref2, rtol=1e-4, atol=1e-5), \
        float(jnp.max(jnp.abs(reward2 - ref2)))

    # 3) bf16 MXU-operand / bf16 HBM-input path (v6e/v7x bandwidth saver);
    #    numerics differ from f32, so a looser tolerance.
    reward3 = jax.block_until_ready(
        reward_model_get_reward(obs2.T, act2.T, params, tile_b=256,
                                features_major=True,
                                compute_dtype=jnp.bfloat16))
    assert reward3.shape == (batch2,)
    assert jnp.allclose(reward3, ref2, rtol=5e-2, atol=5e-2), \
        float(jnp.max(jnp.abs(reward3 - ref2)))

    print("KERNEL_OK")
</pallas_src>

<mosaic_0001>
module attributes {stable_mosaic.version = 11 : i64} {
  func.func @reward_mlp_kernel(%arg0: i32, %arg1: memref<20x128xf32, #tpu.memory_space<vmem>>, %arg2: memref<12x128xf32, #tpu.memory_space<vmem>>, %arg3: memref<32x20xf32, #tpu.memory_space<vmem>>, %arg4: memref<32x12xf32, #tpu.memory_space<vmem>>, %arg5: memref<32x1xf32, #tpu.memory_space<vmem>>, %arg6: memref<32x32xf32, #tpu.memory_space<vmem>>, %arg7: memref<32x1xf32, #tpu.memory_space<vmem>>, %arg8: memref<32x32xf32, #tpu.memory_space<vmem>>, %arg9: memref<32x1xf32, #tpu.memory_space<vmem>>, %arg10: memref<1x32xf32, #tpu.memory_space<vmem>>, %arg11: memref<1x1xf32, #tpu.memory_space<vmem>>, %arg12: memref<1x128xf32, #tpu.memory_space<vmem>>) attributes {dimension_semantics = [#tpu.dimension_semantics<parallel>], iteration_bounds = array<i64: 1>, scalar_prefetch = 0 : i64, scratch_operands = 0 : i64, tpu.core_type = #tpu.core_type<tc>, window_params = [{transform_indices = @transform_0, window_bounds = array<i64: 20, 128>}, {transform_indices = @transform_1, window_bounds = array<i64: 12, 128>}, {pipeline_mode = #tpu.pipeline_mode<synchronous>, transform_indices = @transform_2, window_bounds = array<i64: 32, 20>}, {pipeline_mode = #tpu.pipeline_mode<synchronous>, transform_indices = @transform_3, window_bounds = array<i64: 32, 12>}, {pipeline_mode = #tpu.pipeline_mode<synchronous>, transform_indices = @transform_4, window_bounds = array<i64: 32, 1>}, {pipeline_mode = #tpu.pipeline_mode<synchronous>, transform_indices = @transform_5, window_bounds = array<i64: 32, 32>}, {pipeline_mode = #tpu.pipeline_mode<synchronous>, transform_indices = @transform_6, window_bounds = array<i64: 32, 1>}, {pipeline_mode = #tpu.pipeline_mode<synchronous>, transform_indices = @transform_7, window_bounds = array<i64: 32, 32>}, {pipeline_mode = #tpu.pipeline_mode<synchronous>, transform_indices = @transform_8, window_bounds = array<i64: 32, 1>}, {pipeline_mode = #tpu.pipeline_mode<synchronous>, transform_indices = @transform_9, window_bounds = array<i64: 1, 32>}, {pipeline_mode = #tpu.pipeline_mode<synchronous>, transform_indices = @transform_10, window_bounds = array<i64: 1, 1>}, {transform_indices = @transform_11, window_bounds = array<i64: 1, 128>}]} {
    %c0 = arith.constant 0 : index
    %c0_0 = arith.constant 0 : index
    %0 = vector.load %arg3[%c0, %c0_0] : memref<32x20xf32, #tpu.memory_space<vmem>>, vector<32x20xf32>
    %c0_1 = arith.constant 0 : index
    %c0_2 = arith.constant 0 : index
    %1 = vector.load %arg1[%c0_1, %c0_2] : memref<20x128xf32, #tpu.memory_space<vmem>>, vector<20x128xf32>
    %cst = arith.constant dense<0.000000e+00> : vector<32x128xf32>
    %2 = tpu.matmul %0, %1, %cst {dimension_numbers = #tpu.dot_dimension_numbers<[1], [0], [0], [1], [0, 0, 1, 1], [], []>} : vector<32x20xf32>, vector<20x128xf32>, vector<32x128xf32> -> vector<32x128xf32>
    %c0_3 = arith.constant 0 : index
    %c0_4 = arith.constant 0 : index
    %3 = vector.load %arg4[%c0_3, %c0_4] : memref<32x12xf32, #tpu.memory_space<vmem>>, vector<32x12xf32>
    %c0_5 = arith.constant 0 : index
    %c0_6 = arith.constant 0 : index
    %4 = vector.load %arg2[%c0_5, %c0_6] : memref<12x128xf32, #tpu.memory_space<vmem>>, vector<12x128xf32>
    %cst_7 = arith.constant dense<0.000000e+00> : vector<32x128xf32>
    %5 = tpu.matmul %3, %4, %cst_7 {dimension_numbers = #tpu.dot_dimension_numbers<[1], [0], [0], [1], [0, 0, 1, 1], [], []>} : vector<32x12xf32>, vector<12x128xf32>, vector<32x128xf32> -> vector<32x128xf32>
    %6 = arith.addf %2, %5 : vector<32x128xf32>
    %c0_8 = arith.constant 0 : index
    %c0_9 = arith.constant 0 : index
    %7 = vector.load %arg5[%c0_8, %c0_9] : memref<32x1xf32, #tpu.memory_space<vmem>>, vector<32x1xf32>
    %8 = vector.broadcast %7 : vector<32x1xf32> to vector<32x128xf32>
    %9 = arith.addf %6, %8 : vector<32x128xf32>
    %cst_10 = arith.constant 0.000000e+00 : f32
    %10 = vector.broadcast %cst_10 : f32 to vector<32x128xf32>
    %11 = arith.cmpf ogt, %9, %10 : vector<32x128xf32>
    %12 = math.exp %9 : vector<32x128xf32>
    %cst_11 = arith.constant 1.000000e+00 : f32
    %13 = vector.broadcast %cst_11 : f32 to vector<32x128xf32>
    %14 = arith.subf %12, %13 : vector<32x128xf32>
    %15 = arith.select %11, %9, %14 : vector<32x128xi1>, vector<32x128xf32>
    %c0_12 = arith.constant 0 : index
    %c0_13 = arith.constant 0 : index
    %16 = vector.load %arg6[%c0_12, %c0_13] : memref<32x32xf32, #tpu.memory_space<vmem>>, vector<32x32xf32>
    %cst_14 = arith.constant dense<0.000000e+00> : vector<32x128xf32>
    %17 = tpu.matmul %16, %15, %cst_14 {dimension_numbers = #tpu.dot_dimension_numbers<[1], [0], [0], [1], [0, 0, 1, 1], [], []>} : vector<32x32xf32>, vector<32x128xf32>, vector<32x128xf32> -> vector<32x128xf32>
    %c0_15 = arith.constant 0 : index
    %c0_16 = arith.constant 0 : index
    %18 = vector.load %arg7[%c0_15, %c0_16] : memref<32x1xf32, #tpu.memory_space<vmem>>, vector<32x1xf32>
    %19 = vector.broadcast %18 : vector<32x1xf32> to vector<32x128xf32>
    %20 = arith.addf %17, %19 : vector<32x128xf32>
    %cst_17 = arith.constant 0.000000e+00 : f32
    %21 = vector.broadcast %cst_17 : f32 to vector<32x128xf32>
    %22 = arith.cmpf ogt, %20, %21 : vector<32x128xf32>
    %23 = math.exp %20 : vector<32x128xf32>
    %cst_18 = arith.constant 1.000000e+00 : f32
    %24 = vector.broadcast %cst_18 : f32 to vector<32x128xf32>
    %25 = arith.subf %23, %24 : vector<32x128xf32>
    %26 = arith.select %22, %20, %25 : vector<32x128xi1>, vector<32x128xf32>
    %c0_19 = arith.constant 0 : index
    %c0_20 = arith.constant 0 : index
    %27 = vector.load %arg8[%c0_19, %c0_20] : memref<32x32xf32, #tpu.memory_space<vmem>>, vector<32x32xf32>
    %cst_21 = arith.constant dense<0.000000e+00> : vector<32x128xf32>
    %28 = tpu.matmul %27, %26, %cst_21 {dimension_numbers = #tpu.dot_dimension_numbers<[1], [0], [0], [1], [0, 0, 1, 1], [], []>} : vector<32x32xf32>, vector<32x128xf32>, vector<32x128xf32> -> vector<32x128xf32>
    %c0_22 = arith.constant 0 : index
    %c0_23 = arith.constant 0 : index
    %29 = vector.load %arg9[%c0_22, %c0_23] : memref<32x1xf32, #tpu.memory_space<vmem>>, vector<32x1xf32>
    %30 = vector.broadcast %29 : vector<32x1xf32> to vector<32x128xf32>
    %31 = arith.addf %28, %30 : vector<32x128xf32>
    %cst_24 = arith.constant 0.000000e+00 : f32
    %32 = vector.broadcast %cst_24 : f32 to vector<32x128xf32>
    %33 = arith.cmpf ogt, %31, %32 : vector<32x128xf32>
    %34 = math.exp %31 : vector<32x128xf32>
    %cst_25 = arith.constant 1.000000e+00 : f32
    %35 = vector.broadcast %cst_25 : f32 to vector<32x128xf32>
    %36 = arith.subf %34, %35 : vector<32x128xf32>
    %37 = arith.select %33, %31, %36 : vector<32x128xi1>, vector<32x128xf32>
    %c0_26 = arith.constant 0 : index
    %c0_27 = arith.constant 0 : index
    %38 = vector.load %arg10[%c0_26, %c0_27] : memref<1x32xf32, #tpu.memory_space<vmem>>, vector<1x32xf32>
    %cst_28 = arith.constant dense<0.000000e+00> : vector<1x128xf32>
    %39 = tpu.matmul %38, %37, %cst_28 {dimension_numbers = #tpu.dot_dimension_numbers<[1], [0], [0], [1], [0, 0, 1, 1], [], []>} : vector<1x32xf32>, vector<32x128xf32>, vector<1x128xf32> -> vector<1x128xf32>
    %c0_29 = arith.constant 0 : index
    %c0_30 = arith.constant 0 : index
    %40 = vector.load %arg11[%c0_29, %c0_30] : memref<1x1xf32, #tpu.memory_space<vmem>>, vector<1x1xf32>
    %41 = vector.broadcast %40 : vector<1x1xf32> to vector<1x128xf32>
    %42 = arith.addf %39, %41 : vector<1x128xf32>
    %c0_31 = arith.constant 0 : index
    %c0_32 = arith.constant 0 : index
    %43 = vector.load %arg12[%c0_31, %c0_32] : memref<1x128xf32, #tpu.memory_space<vmem>>, vector<1x128xf32>
    tpu.vector_store %arg12[%c0_31, %c0_32], %42 {strides = array<i32>} : memref<1x128xf32, #tpu.memory_space<vmem>>, vector<1x128xf32>,
    return
  }
  func.func @transform_0(%arg0: i32) -> (i32, i32) {
    %c0_i32 = arith.constant 0 : i32
    %c0_i32_0 = arith.constant 0 : i32
    return %c0_i32, %arg0 : i32, i32
  }
  func.func @transform_1(%arg0: i32) -> (i32, i32) {
    %c0_i32 = arith.constant 0 : i32
    %c0_i32_0 = arith.constant 0 : i32
    return %c0_i32, %arg0 : i32, i32
  }
  func.func @transform_2(%arg0: i32) -> (i32, i32) {
    %c0_i32 = arith.constant 0 : i32
    %c0_i32_0 = arith.constant 0 : i32
    %c0_i32_1 = arith.constant 0 : i32
    return %c0_i32, %c0_i32_0 : i32, i32
  }
  func.func @transform_3(%arg0: i32) -> (i32, i32) {
    %c0_i32 = arith.constant 0 : i32
    %c0_i32_0 = arith.constant 0 : i32
    %c0_i32_1 = arith.constant 0 : i32
    return %c0_i32, %c0_i32_0 : i32, i32
  }
  func.func @transform_4(%arg0: i32) -> (i32, i32) {
    %c0_i32 = arith.constant 0 : i32
    %c0_i32_0 = arith.constant 0 : i32
    %c0_i32_1 = arith.constant 0 : i32
    return %c0_i32, %c0_i32_0 : i32, i32
  }
  func.func @transform_5(%arg0: i32) -> (i32, i32) {
    %c0_i32 = arith.constant 0 : i32
    %c0_i32_0 = arith.constant 0 : i32
    %c0_i32_1 = arith.constant 0 : i32
    return %c0_i32, %c0_i32_0 : i32, i32
  }
  func.func @transform_6(%arg0: i32) -> (i32, i32) {
    %c0_i32 = arith.constant 0 : i32
    %c0_i32_0 = arith.constant 0 : i32
    %c0_i32_1 = arith.constant 0 : i32
    return %c0_i32, %c0_i32_0 : i32, i32
  }
  func.func @transform_7(%arg0: i32) -> (i32, i32) {
    %c0_i32 = arith.constant 0 : i32
    %c0_i32_0 = arith.constant 0 : i32
    %c0_i32_1 = arith.constant 0 : i32
    return %c0_i32, %c0_i32_0 : i32, i32
  }
  func.func @transform_8(%arg0: i32) -> (i32, i32) {
    %c0_i32 = arith.constant 0 : i32
    %c0_i32_0 = arith.constant 0 : i32
    %c0_i32_1 = arith.constant 0 : i32
    return %c0_i32, %c0_i32_0 : i32, i32
  }
  func.func @transform_9(%arg0: i32) -> (i32, i32) {
    %c0_i32 = arith.constant 0 : i32
    %c0_i32_0 = arith.constant 0 : i32
    %c0_i32_1 = arith.constant 0 : i32
    return %c0_i32, %c0_i32_0 : i32, i32
  }
  func.func @transform_10(%arg0: i32) -> (i32, i32) {
    %c0_i32 = arith.constant 0 : i32
    %c0_i32_0 = arith.constant 0 : i32
    %c0_i32_1 = arith.constant 0 : i32
    return %c0_i32, %c0_i32_0 : i32, i32
  }
  func.func @transform_11(%arg0: i32) -> (i32, i32) {
    %c0_i32 = arith.constant 0 : i32
    %c0_i32_0 = arith.constant 0 : i32
    return %c0_i32, %arg0 : i32, i32
  }
}

</mosaic_0001>

<llo_original>
// kernel: tpu_custom_call.1
$region0: #{tpu_custom_call.1}
  #allocation0 [shape = 'u32[]', space=smem, size = 0x4, offset = 0x4, fixed_abs, tag = 'smem constant byte address 0x4 - core index']
  #allocation1 [shape = 'u32[144,128]{1,0:T(1,128)}', space=vmem, size = 0x12000, scoped, tag = 'internal scratch']
  #allocation2 [shape = 'f32[1,1]{1,0:T(1,128)S(1)}', space=vmem, size = 0x200, scoped, tag = 'scoped memory for tpu_custom_call.1']
  %s0 = inlined_call_operand.vmem [shape: f32[20,8], index: 0, kind: input, shape index: {}]
  %s1 = inlined_call_operand.vmem [shape: f32[12,8], index: 1, kind: input, shape index: {}]
  %s2 = inlined_call_operand.vmem [shape: f32[32,20], index: 2, kind: input, shape index: {}]
  %s3 = inlined_call_operand.vmem [shape: f32[32,12], index: 3, kind: input, shape index: {}]
  %s4 = inlined_call_operand.vmem [shape: f32[32,1], index: 4, kind: input, shape index: {}]
  %s5 = inlined_call_operand.vmem [shape: f32[32,32], index: 5, kind: input, shape index: {}]
  %s6 = inlined_call_operand.vmem [shape: f32[32,1], index: 6, kind: input, shape index: {}]
  %s7 = inlined_call_operand.vmem [shape: f32[32,32], index: 7, kind: input, shape index: {}]
  %s8 = inlined_call_operand.vmem [shape: f32[32,1], index: 8, kind: input, shape index: {}]
  %s9 = inlined_call_operand.vmem [shape: f32[1,32], index: 9, kind: input, shape index: {}]
  %s10 = inlined_call_operand.<no memory space> [shape: f32[1,1], index: 10, kind: input, shape index: {}]
  %s11 = inlined_call_operand.hbm [shape: f32[1,8], index: 11, kind: output, shape index: {}]
  %s12 = sld [smem:[#allocation0]]
  $region54: #{tpu_custom_call.1} parent=0
    _
  %s14 = ssub.s32 1, %s12
  %s15 = scalar_select 0, %s14, %s12
  %v16 = vstv %s10
  %17 = vst [vmem:[#allocation2] sm:$0x1] %v16
  $region1: #{tpu_custom_call.1} parent=0
    #allocation3 [shape = 'u8[512]{0}', space=vmem, size = 0x400, scoped, tag = 'output window, operand 0, single buffered']
    #allocation4 [shape = 's32[1]{0}', space=sflag, size = 0x4, scoped, tag = 'scoped memory for tpu_custom_call.1']
    %18 = vsyncpa [#allocation4], 0
    // Predicated region
    $region2: #{tpu_custom_call.1} parent=1 // pred_check
      _
    $region3: #{tpu_custom_call.1} parent=1 // pred_check_branch
      %20 = sbr.rel (0) target = $region5
    $region4: #{tpu_custom_call.1} parent=1 // pred_region
      _
    $region5: #{tpu_custom_call.1} parent=1 // pred_fallthru
      _
    // Predicated region
    $region6: #{tpu_custom_call.1} parent=1 // pred_check
      _
    $region7: #{tpu_custom_call.1} parent=1 // pred_check_branch
      %22 = sbr.rel (0) target = $region9
    $region8: #{tpu_custom_call.1} parent=1 // pred_region
      _
    $region9: #{tpu_custom_call.1} parent=1 // pred_fallthru
      _
    // Predicated region
    $region10: #{tpu_custom_call.1} parent=1 // pred_check
      _
    $region11: #{tpu_custom_call.1} parent=1 // pred_check_branch
      %24 = sbr.rel (0) target = $region13
    $region12: #{tpu_custom_call.1} parent=1 // pred_region
      _
    $region13: #{tpu_custom_call.1} parent=1 // pred_fallthru
      _
    // Predicated region
    $region14: #{tpu_custom_call.1} parent=1 // pred_check
      _
    $region15: #{tpu_custom_call.1} parent=1 // pred_check_branch
      %26 = sbr.rel (0) target = $region17
    $region16: #{tpu_custom_call.1} parent=1 // pred_region
      _
    $region17: #{tpu_custom_call.1} parent=1 // pred_fallthru
      _
    // Predicated region
    $region18: #{tpu_custom_call.1} parent=1 // pred_check
      _
    $region19: #{tpu_custom_call.1} parent=1 // pred_check_branch
      %28 = sbr.rel (0) target = $region21
    $region20: #{tpu_custom_call.1} parent=1 // pred_region
      _
    $region21: #{tpu_custom_call.1} parent=1 // pred_fallthru
      _
    // Predicated region
    $region22: #{tpu_custom_call.1} parent=1 // pred_check
      _
    $region23: #{tpu_custom_call.1} parent=1 // pred_check_branch
      %30 = sbr.rel (0) target = $region25
    $region24: #{tpu_custom_call.1} parent=1 // pred_region
      _
    $region25: #{tpu_custom_call.1} parent=1 // pred_fallthru
      _
    // Predicated region
    $region26: #{tpu_custom_call.1} parent=1 // pred_check
      _
    $region27: #{tpu_custom_call.1} parent=1 // pred_check_branch
      %32 = sbr.rel (0) target = $region29
    $region28: #{tpu_custom_call.1} parent=1 // pred_region
      _
    $region29: #{tpu_custom_call.1} parent=1 // pred_fallthru
      _
    // Predicated region
    $region30: #{tpu_custom_call.1} parent=1 // pred_check
      _
    $region31: #{tpu_custom_call.1} parent=1 // pred_check_branch
      %34 = sbr.rel (0) target = $region33
    $region32: #{tpu_custom_call.1} parent=1 // pred_region
      _
    $region33: #{tpu_custom_call.1} parent=1 // pred_fallthru
      _
    // Predicated region
    $region34: #{tpu_custom_call.1} parent=1 // pred_check
      _
    $region35: #{tpu_custom_call.1} parent=1 // pred_check_branch
      %36 = sbr.rel (0) target = $region37
    $region36: #{tpu_custom_call.1} parent=1 // pred_region
      _
    $region37: #{tpu_custom_call.1} parent=1 // pred_fallthru
      _
    // Predicated region
    $region38: #{tpu_custom_call.1} parent=1 // pred_check
      _
    $region39: #{tpu_custom_call.1} parent=1 // pred_check_branch
      %38 = sbr.rel (0) target = $region41
    $region40: #{tpu_custom_call.1} parent=1 // pred_region
      _
    $region41: #{tpu_custom_call.1} parent=1 // pred_fallthru
      _
    // Predicated region
    $region42: #{tpu_custom_call.1} parent=1 // pred_check
      _
    $region43: #{tpu_custom_call.1} parent=1 // pred_check_branch
      %40 = sbr.rel (0) target = $region45
    $region44: #{tpu_custom_call.1} parent=1 // pred_region
      _
    $region45: #{tpu_custom_call.1} parent=1 // pred_fallthru
      _
    %v41 = vld [vmem:[%s2] sm:$0xff]
    %v42 = vld [vmem:[%s2 + $0x8] sm:$0xff]
    %v43 = vld [vmem:[%s2 + $0x10] sm:$0xff]
    %v44 = vld [vmem:[%s2 + $0x18] sm:$0xff]
    %v45 = vld [vmem:[%s0] sm:$0xff]
    %v46 = vld [vmem:[%s0 + $0x8] sm:$0xff]
    %v47 = vld [vmem:[%s0 + $0x10] sm:$0xf]
    %v48 = vld [vmem:[%s3] sm:$0xff]
    %v49 = vld [vmem:[%s3 + $0x8] sm:$0xff]
    %v50 = vld [vmem:[%s3 + $0x10] sm:$0xff]
    %v51 = vld [vmem:[%s3 + $0x18] sm:$0xff]
    %v52 = vld [vmem:[%s1] sm:$0xff]
    %v53 = vld [vmem:[%s1 + $0x8] sm:$0xf]
    %vm54 = vcmask 97280
    %v56 = vsel %vm54, %v48, 0
    %v59 = vsel %vm54, %v49, 0
    %v62 = vsel %vm54, %v50, 0
    %v65 = vsel %vm54, %v51, 0
    %vm67 = vcmask 1043456
    %v69 = vsel %vm67, %v53, 0
    %71 = vmatprep.subr.mxu0 0.0
    %72 = vmatpush1.msra.mxu0 0.0
    %73 = vmatprep.subr.mxu0 0.0
    %74 = vmatpush1.msra.mxu0 0.0
    %75 = vmatprep.subr.mxu0 0.0
    %76 = vmatpush1.msra.mxu0 0.0
    %77 = vmatprep.subr.mxu0 0.0
    %78 = vmatpush1.msra.mxu0 0.0
    %79 = vmatprep.subr.mxu0 0.0
    %80 = vmatpush1.msra.mxu0 0.0
    %81 = vmatprep.subr.mxu0 0.0
    %82 = vmatpush1.msra.mxu0 0.0
    %83 = vmatprep.subr.mxu0 0.0
    %84 = vmatpush1.msra.mxu0 0.0
    %85 = vmatprep.subr.mxu0 0.0
    %86 = vmatpush1.msra.mxu0 0.0
    %87 = vmatprep.subr.mxu0 0.0
    %88 = vmatpush1.msra.mxu0 0.0
    %89 = vmatprep.subr.mxu0 0.0
    %90 = vmatpush1.msra.mxu0 0.0
    %91 = vmatprep.subr.mxu0 0.0
    %92 = vmatpush1.msra.mxu0 0.0
    %93 = vmatprep.subr.mxu0 0.0
    %94 = vmatpush1.msra.mxu0 0.0
    %95 = vmatprep.subr.mxu0 0.0
    %96 = vmatpush1.msra.mxu0 0.0
    %97 = vmatprep.subr.mxu0 0.0
    %98 = vmatpush1.msra.mxu0 0.0
    %99 = vmatprep.subr.mxu0 0.0
    %100 = vmatpush1.msra.mxu0 %v69
    %101 = vmatprep.subr.mxu0 0.0
    %102 = vmatpush1.msra.mxu0 %v52
    %103 = vmatprep.subr.mxu0 0.0
    %104 = vmatpush2.msra.mxu0 0.0
    %105 = vmatprep.subr.mxu0 0.0
    %106 = vmatpush2.msra.mxu0 0.0
    %107 = vmatprep.subr.mxu0 0.0
    %108 = vmatpush2.msra.mxu0 0.0
    %109 = vmatprep.subr.mxu0 0.0
    %110 = vmatpush2.msra.mxu0 0.0
    %111 = vmatprep.subr.mxu0 0.0
    %112 = vmatpush2.msra.mxu0 0.0
    %113 = vmatprep.subr.mxu0 0.0
    %114 = vmatpush2.msra.mxu0 0.0
    %115 = vmatprep.subr.mxu0 0.0
    %116 = vmatpush2.msra.mxu0 0.0
    %117 = vmatprep.subr.mxu0 0.0
    %118 = vmatpush2.msra.mxu0 0.0
    %119 = vmatprep.subr.mxu0 0.0
    %120 = vmatpush2.msra.mxu0 0.0
    %121 = vmatprep.subr.mxu0 0.0
    %122 = vmatpush2.msra.mxu0 0.0
    %123 = vmatprep.subr.mxu0 0.0
    %124 = vmatpush2.msra.mxu0 0.0
    %125 = vmatprep.subr.mxu0 0.0
    %126 = vmatpush2.msra.mxu0 0.0
    %127 = vmatprep.subr.mxu0 0.0
    %128 = vmatpush2.msra.mxu0 0.0
    %129 = vmatprep.subr.mxu0 0.0
    %130 = vmatpush2.msra.mxu0 0.0
    %131 = vmatprep.subr.mxu0 0.0
    %132 = vmatpush2.msra.mxu0 0.0
    %133 = vmatprep.subr.mxu0 0.0
    %134 = vmatpush2.msra.mxu0 0.0
    %135 = vmatprep.mubr.f32.mxu0 0.0
    %136 = vmatmul.mubr.f32.gmra.mxu0 %v56
    %v137 = vpop.f32.mrf.mxu0
    %v138 = vadd.f32 0.0, %v137
    %v139 = vpop.f32.mrf.mxu0
    %140 = vmatprep.mubr.f32.mxu0 0.0
    %141 = vmatmul.mubr.f32.gmra.mxu0 %v59
    %v142 = vpop.f32.mrf.mxu0
    %v143 = vadd.f32 0.0, %v142
    %v144 = vpop.f32.mrf.mxu0
    %145 = vmatprep.mubr.f32.mxu0 0.0
    %146 = vmatmul.mubr.f32.gmra.mxu0 %v62
    %v147 = vpop.f32.mrf.mxu0
    %v148 = vadd.f32 0.0, %v147
    %v149 = vpop.f32.mrf.mxu0
    %150 = vmatprep.mubr.f32.mxu0 0.0
    %151 = vmatmul.mubr.f32.gmra.mxu0 %v65
    %v152 = vpop.f32.mrf.mxu0
    %v153 = vadd.f32 0.0, %v152
    %v154 = vpop.f32.mrf.mxu0
    %155 = vdwg.mxu0
    %vm156 = vcmask 162816
    %v158 = vsel %vm156, %v41, 0
    %v161 = vsel %vm156, %v42, 0
    %v164 = vsel %vm156, %v43, 0
    %v167 = vsel %vm156, %v44, 0
    %v170 = vsel %vm67, %v47, 0
    %172 = vmatprep.subr.mxu0 0.0
    %173 = vmatpush1.msra.mxu0 0.0
    %174 = vmatprep.subr.mxu0 0.0
    %175 = vmatpush1.msra.mxu0 0.0
    %176 = vmatprep.subr.mxu0 0.0
    %177 = vmatpush1.msra.mxu0 0.0
    %178 = vmatprep.subr.mxu0 0.0
    %179 = vmatpush1.msra.mxu0 0.0
    %180 = vmatprep.subr.mxu0 0.0
    %181 = vmatpush1.msra.mxu0 0.0
    %182 = vmatprep.subr.mxu0 0.0
    %183 = vmatpush1.msra.mxu0 0.0
    %184 = vmatprep.subr.mxu0 0.0
    %185 = vmatpush1.msra.mxu0 0.0
    %186 = vmatprep.subr.mxu0 0.0
    %187 = vmatpush1.msra.mxu0 0.0
    %188 = vmatprep.subr.mxu0 0.0
    %189 = vmatpush1.msra.mxu0 0.0
    %190 = vmatprep.subr.mxu0 0.0
    %191 = vmatpush1.msra.mxu0 0.0
    %192 = vmatprep.subr.mxu0 0.0
    %193 = vmatpush1.msra.mxu0 0.0
    %194 = vmatprep.subr.mxu0 0.0
    %195 = vmatpush1.msra.mxu0 0.0
    %196 = vmatprep.subr.mxu0 0.0
    %197 = vmatpush1.msra.mxu0 0.0
    %198 = vmatprep.subr.mxu0 0.0
    %199 = vmatpush1.msra.mxu0 %v170
    %200 = vmatprep.subr.mxu0 0.0
    %201 = vmatpush1.msra.mxu0 %v46
    %202 = vmatprep.subr.mxu0 0.0
    %203 = vmatpush1.msra.mxu0 %v45
    %204 = vmatprep.subr.mxu0 0.0
    %205 = vmatpush2.msra.mxu0 0.0
    %206 = vmatprep.subr.mxu0 0.0
    %207 = vmatpush2.msra.mxu0 0.0
    %208 = vmatprep.subr.mxu0 0.0
    %209 = vmatpush2.msra.mxu0 0.0
    %210 = vmatprep.subr.mxu0 0.0
    %211 = vmatpush2.msra.mxu0 0.0
    %212 = vmatprep.subr.mxu0 0.0
    %213 = vmatpush2.msra.mxu0 0.0
    %214 = vmatprep.subr.mxu0 0.0
    %215 = vmatpush2.msra.mxu0 0.0
    %216 = vmatprep.subr.mxu0 0.0
    %217 = vmatpush2.msra.mxu0 0.0
    %218 = vmatprep.subr.mxu0 0.0
    %219 = vmatpush2.msra.mxu0 0.0
    %220 = vmatprep.subr.mxu0 0.0
    %221 = vmatpush2.msra.mxu0 0.0
    %222 = vmatprep.subr.mxu0 0.0
    %223 = vmatpush2.msra.mxu0 0.0
    %224 = vmatprep.subr.mxu0 0.0
    %225 = vmatpush2.msra.mxu0 0.0
    %226 = vmatprep.subr.mxu0 0.0
    %227 = vmatpush2.msra.mxu0 0.0
    %228 = vmatprep.subr.mxu0 0.0
    %229 = vmatpush2.msra.mxu0 0.0
    %230 = vmatprep.subr.mxu0 0.0
    %231 = vmatpush2.msra.mxu0 0.0
    %232 = vmatprep.subr.mxu0 0.0
    %233 = vmatpush2.msra.mxu0 0.0
    %234 = vmatprep.subr.mxu0 0.0
    %235 = vmatpush2.msra.mxu0 0.0
    %236 = vmatprep.mubr.f32.mxu0 0.0
    %237 = vmatmul.mubr.f32.gmra.mxu0 %v158
    %v238 = vpop.f32.mrf.mxu0
    %v239 = vadd.f32 %v138, %v238
    %v240 = vpop.f32.mrf.mxu0
    %241 = vmatprep.mubr.f32.mxu0 0.0
    %242 = vmatmul.mubr.f32.gmra.mxu0 %v161
    %v243 = vpop.f32.mrf.mxu0
    %v244 = vadd.f32 %v143, %v243
    %v245 = vpop.f32.mrf.mxu0
    %246 = vmatprep.mubr.f32.mxu0 0.0
    %247 = vmatmul.mubr.f32.gmra.mxu0 %v164
    %v248 = vpop.f32.mrf.mxu0
    %v249 = vadd.f32 %v148, %v248
    %v250 = vpop.f32.mrf.mxu0
    %251 = vmatprep.mubr.f32.mxu0 0.0
    %252 = vmatmul.mubr.f32.gmra.mxu0 %v167
    %v253 = vpop.f32.mrf.mxu0
    %v254 = vadd.f32 %v153, %v253
    %v255 = vpop.f32.mrf.mxu0
    %256 = vdwg.mxu0
    %v257 = vld [vmem:[%s4] sm:$0xff]
    %v258 = vld [vmem:[%s4 + $0x8] sm:$0xff]
    %v259 = vld [vmem:[%s4 + $0x10] sm:$0xff]
    %v260 = vld [vmem:[%s4 + $0x18] sm:$0xff]
    %262 = vset.pattern.permute.xlu0 0
    %263 = vperm.xlu0 %262, %v257
    %v264 = vpop.permute.xlu0 %263
    %267 = vset.pattern.permute.xlu0 0
    %268 = vperm.xlu0 %267, %v258
    %v269 = vpop.permute.xlu0 %268
    %272 = vset.pattern.permute.xlu0 0
    %273 = vperm.xlu0 %272, %v259
    %v274 = vpop.permute.xlu0 %273
    %277 = vset.pattern.permute.xlu0 0
    %278 = vperm.xlu0 %277, %v260
    %v279 = vpop.permute.xlu0 %278
    %v281 = vadd.f32 %v239, %v264
    %v282 = vadd.f32 %v244, %v269
    %v283 = vadd.f32 %v249, %v274
    %v284 = vadd.f32 %v254, %v279
    %vm285 = vcmp.gt.f32.partialorder %v281, 0.0
    %vm286 = vcmp.gt.f32.partialorder %v282, 0.0
    %vm287 = vcmp.gt.f32.partialorder %v283, 0.0
    %vm288 = vcmp.gt.f32.partialorder %v284, 0.0
    %v289 = vmul.f32 %v281, 1.442695
    %v290 = vpow.pop %v289
    %v291 = vmul.f32 %v282, 1.442695
    %v292 = vpow.pop %v291
    %v293 = vmul.f32 %v283, 1.442695
    %v294 = vpow.pop %v293
    %v295 = vmul.f32 %v284, 1.442695
    %v296 = vpow.pop %v295
    %v297 = vsub.f32 %v290, 1.0
    %v298 = vsub.f32 %v292, 1.0
    %v299 = vsub.f32 %v294, 1.0
    %v300 = vsub.f32 %v296, 1.0
    %v301 = vsel %vm285, %v281, %v297
    %v302 = vsel %vm286, %v282, %v298
    %v303 = vsel %vm287, %v283, %v299
    %v304 = vsel %vm288, %v284, %v300
    %v305 = vld [vmem:[%s5] sm:$0xff]
    %v306 = vld [vmem:[%s5 + $0x8] sm:$0xff]
    %v307 = vld [vmem:[%s5 + $0x10] sm:$0xff]
    %v308 = vld [vmem:[%s5 + $0x18] sm:$0xff]
    %v309 = vld [vmem:[%s6] sm:$0xff]
    %v310 = vld [vmem:[%s6 + $0x8] sm:$0xff]
    %v311 = vld [vmem:[%s6 + $0x10] sm:$0xff]
    %v312 = vld [vmem:[%s6 + $0x18] sm:$0xff]
    %314 = vset.pattern.permute.xlu0 0
    %315 = vperm.xlu0 %314, %v309
    %v316 = vpop.permute.xlu0 %315
    %319 = vset.pattern.permute.xlu0 0
    %320 = vperm.xlu0 %319, %v310
    %v321 = vpop.permute.xlu0 %320
    %324 = vset.pattern.permute.xlu0 0
    %325 = vperm.xlu0 %324, %v311
    %v326 = vpop.permute.xlu0 %325
    %329 = vset.pattern.permute.xlu0 0
    %330 = vperm.xlu0 %329, %v312
    %v331 = vpop.permute.xlu0 %330
    %vm333 = vcmask 261120
    %v335 = vsel %vm333, %v305, 0
    %v338 = vsel %vm333, %v306, 0
    %v341 = vsel %vm333, %v307, 0
    %v344 = vsel %vm333, %v308, 0
    %346 = vmatprep.subr.mxu0 0.0
    %347 = vmatpush1.msra.mxu0 0.0
    %348 = vmatprep.subr.mxu0 0.0
    %349 = vmatpush1.msra.mxu0 0.0
    %350 = vmatprep.subr.mxu0 0.0
    %351 = vmatpush1.msra.mxu0 0.0
    %352 = vmatprep.subr.mxu0 0.0
    %353 = vmatpush1.msra.mxu0 0.0
    %354 = vmatprep.subr.mxu0 0.0
    %355 = vmatpush1.msra.mxu0 0.0
    %356 = vmatprep.subr.mxu0 0.0
    %357 = vmatpush1.msra.mxu0 0.0
    %358 = vmatprep.subr.mxu0 0.0
    %359 = vmatpush1.msra.mxu0 0.0
    %360 = vmatprep.subr.mxu0 0.0
    %361 = vmatpush1.msra.mxu0 0.0
    %362 = vmatprep.subr.mxu0 0.0
    %363 = vmatpush1.msra.mxu0 0.0
    %364 = vmatprep.subr.mxu0 0.0
    %365 = vmatpush1.msra.mxu0 0.0
    %366 = vmatprep.subr.mxu0 0.0
    %367 = vmatpush1.msra.mxu0 0.0
    %368 = vmatprep.subr.mxu0 0.0
    %369 = vmatpush1.msra.mxu0 0.0
    %370 = vmatprep.subr.mxu0 0.0
    %371 = vmatpush1.msra.mxu0 %v304
    %372 = vmatprep.subr.mxu0 0.0
    %373 = vmatpush1.msra.mxu0 %v303
    %374 = vmatprep.subr.mxu0 0.0
    %375 = vmatpush1.msra.mxu0 %v302
    %376 = vmatprep.subr.mxu0 0.0
    %377 = vmatpush1.msra.mxu0 %v301
    %378 = vmatprep.subr.mxu0 0.0
    %379 = vmatpush2.msra.mxu0 0.0
    %380 = vmatprep.subr.mxu0 0.0
    %381 = vmatpush2.msra.mxu0 0.0
    %382 = vmatprep.subr.mxu0 0.0
    %383 = vmatpush2.msra.mxu0 0.0
    %384 = vmatprep.subr.mxu0 0.0
    %385 = vmatpush2.msra.mxu0 0.0
    %386 = vmatprep.subr.mxu0 0.0
    %387 = vmatpush2.msra.mxu0 0.0
    %388 = vmatprep.subr.mxu0 0.0
    %389 = vmatpush2.msra.mxu0 0.0
    %390 = vmatprep.subr.mxu0 0.0
    %391 = vmatpush2.msra.mxu0 0.0
    %392 = vmatprep.subr.mxu0 0.0
    %393 = vmatpush2.msra.mxu0 0.0
    %394 = vmatprep.subr.mxu0 0.0
    %395 = vmatpush2.msra.mxu0 0.0
    %396 = vmatprep.subr.mxu0 0.0
    %397 = vmatpush2.msra.mxu0 0.0
    %398 = vmatprep.subr.mxu0 0.0
    %399 = vmatpush2.msra.mxu0 0.0
    %400 = vmatprep.subr.mxu0 0.0
    %401 = vmatpush2.msra.mxu0 0.0
    %402 = vmatprep.subr.mxu0 0.0
    %403 = vmatpush2.msra.mxu0 0.0
    %404 = vmatprep.subr.mxu0 0.0
    %405 = vmatpush2.msra.mxu0 0.0
    %406 = vmatprep.subr.mxu0 0.0
    %407 = vmatpush2.msra.mxu0 0.0
    %408 = vmatprep.subr.mxu0 0.0
    %409 = vmatpush2.msra.mxu0 0.0
    %410 = vmatprep.mubr.f32.mxu0 0.0
    %411 = vmatmul.mubr.f32.gmra.mxu0 %v335
    %v412 = vpop.f32.mrf.mxu0
    %v413 = vadd.f32 %v316, %v412
    %v414 = vpop.f32.mrf.mxu0
    %415 = vmatprep.mubr.f32.mxu0 0.0
    %416 = vmatmul.mubr.f32.gmra.mxu0 %v338
    %v417 = vpop.f32.mrf.mxu0
    %v418 = vadd.f32 %v321, %v417
    %v419 = vpop.f32.mrf.mxu0
    %420 = vmatprep.mubr.f32.mxu0 0.0
    %421 = vmatmul.mubr.f32.gmra.mxu0 %v341
    %v422 = vpop.f32.mrf.mxu0
    %v423 = vadd.f32 %v326, %v422
    %v424 = vpop.f32.mrf.mxu0
    %425 = vmatprep.mubr.f32.mxu0 0.0
    %426 = vmatmul.mubr.f32.gmra.mxu0 %v344
    %v427 = vpop.f32.mrf.mxu0
    %v428 = vadd.f32 %v331, %v427
    %v429 = vpop.f32.mrf.mxu0
    %430 = vdwg.mxu0
    %vm431 = vcmp.gt.f32.partialorder %v413, 0.0
    %vm432 = vcmp.gt.f32.partialorder %v418, 0.0
    %vm433 = vcmp.gt.f32.partialorder %v423, 0.0
    %vm434 = vcmp.gt.f32.partialorder %v428, 0.0
    %v435 = vmul.f32 %v413, 1.442695
    %v436 = vpow.pop %v435
    %v437 = vmul.f32 %v418, 1.442695
    %v438 = vpow.pop %v437
    %v439 = vmul.f32 %v423, 1.442695
    %v440 = vpow.pop %v439
    %v441 = vmul.f32 %v428, 1.442695
    %v442 = vpow.pop %v441
    %v443 = vsub.f32 %v436, 1.0
    %v444 = vsub.f32 %v438, 1.0
    %v445 = vsub.f32 %v440, 1.0
    %v446 = vsub.f32 %v442, 1.0
    %v447 = vsel %vm431, %v413, %v443
    %v448 = vsel %vm432, %v418, %v444
    %v449 = vsel %vm433, %v423, %v445
    %v450 = vsel %vm434, %v428, %v446
    %v451 = vld [vmem:[%s7] sm:$0xff]
    %v452 = vld [vmem:[%s7 + $0x8] sm:$0xff]
    %v453 = vld [vmem:[%s7 + $0x10] sm:$0xff]
    %v454 = vld [vmem:[%s7 + $0x18] sm:$0xff]
    %v455 = vld [vmem:[%s8] sm:$0xff]
    %v456 = vld [vmem:[%s8 + $0x8] sm:$0xff]
    %v457 = vld [vmem:[%s8 + $0x10] sm:$0xff]
    %v458 = vld [vmem:[%s8 + $0x18] sm:$0xff]
    %460 = vset.pattern.permute.xlu0 0
    %461 = vperm.xlu0 %460, %v455
    %v462 = vpop.permute.xlu0 %461
    %465 = vset.pattern.permute.xlu0 0
    %466 = vperm.xlu0 %465, %v456
    %v467 = vpop.permute.xlu0 %466
    %470 = vset.pattern.permute.xlu0 0
    %471 = vperm.xlu0 %470, %v457
    %v472 = vpop.permute.xlu0 %471
    %475 = vset.pattern.permute.xlu0 0
    %476 = vperm.xlu0 %475, %v458
    %v477 = vpop.permute.xlu0 %476
    %v480 = vsel %vm333, %v451, 0
    %v483 = vsel %vm333, %v452, 0
    %v486 = vsel %vm333, %v453, 0
    %v489 = vsel %vm333, %v454, 0
    %491 = vmatprep.subr.mxu0 0.0
    %492 = vmatpush1.msra.mxu0 0.0
    %493 = vmatprep.subr.mxu0 0.0
    %494 = vmatpush1.msra.mxu0 0.0
    %495 = vmatprep.subr.mxu0 0.0
    %496 = vmatpush1.msra.mxu0 0.0
    %497 = vmatprep.subr.mxu0 0.0
    %498 = vmatpush1.msra.mxu0 0.0
    %499 = vmatprep.subr.mxu0 0.0
    %500 = vmatpush1.msra.mxu0 0.0
    %501 = vmatprep.subr.mxu0 0.0
    %502 = vmatpush1.msra.mxu0 0.0
    %503 = vmatprep.subr.mxu0 0.0
    %504 = vmatpush1.msra.mxu0 0.0
    %505 = vmatprep.subr.mxu0 0.0
    %506 = vmatpush1.msra.mxu0 0.0
    %507 = vmatprep.subr.mxu0 0.0
    %508 = vmatpush1.msra.mxu0 0.0
    %509 = vmatprep.subr.mxu0 0.0
    %510 = vmatpush1.msra.mxu0 0.0
    %511 = vmatprep.subr.mxu0 0.0
    %512 = vmatpush1.msra.mxu0 0.0
    %513 = vmatprep.subr.mxu0 0.0
    %514 = vmatpush1.msra.mxu0 0.0
    %515 = vmatprep.subr.mxu0 0.0
    %516 = vmatpush1.msra.mxu0 %v450
    %517 = vmatprep.subr.mxu0 0.0
    %518 = vmatpush1.msra.mxu0 %v449
    %519 = vmatprep.subr.mxu0 0.0
    %520 = vmatpush1.msra.mxu0 %v448
    %521 = vmatprep.subr.mxu0 0.0
    %522 = vmatpush1.msra.mxu0 %v447
    %523 = vmatprep.subr.mxu0 0.0
    %524 = vmatpush2.msra.mxu0 0.0
    %525 = vmatprep.subr.mxu0 0.0
    %526 = vmatpush2.msra.mxu0 0.0
    %527 = vmatprep.subr.mxu0 0.0
    %528 = vmatpush2.msra.mxu0 0.0
    %529 = vmatprep.subr.mxu0 0.0
    %530 = vmatpush2.msra.mxu0 0.0
    %531 = vmatprep.subr.mxu0 0.0
    %532 = vmatpush2.msra.mxu0 0.0
    %533 = vmatprep.subr.mxu0 0.0
    %534 = vmatpush2.msra.mxu0 0.0
    %535 = vmatprep.subr.mxu0 0.0
    %536 = vmatpush2.msra.mxu0 0.0
    %537 = vmatprep.subr.mxu0 0.0
    %538 = vmatpush2.msra.mxu0 0.0
    %539 = vmatprep.subr.mxu0 0.0
    %540 = vmatpush2.msra.mxu0 0.0
    %541 = vmatprep.subr.mxu0 0.0
    %542 = vmatpush2.msra.mxu0 0.0
    %543 = vmatprep.subr.mxu0 0.0
    %544 = vmatpush2.msra.mxu0 0.0
    %545 = vmatprep.subr.mxu0 0.0
    %546 = vmatpush2.msra.mxu0 0.0
    %547 = vmatprep.subr.mxu0 0.0
    %548 = vmatpush2.msra.mxu0 0.0
    %549 = vmatprep.subr.mxu0 0.0
    %550 = vmatpush2.msra.mxu0 0.0
    %551 = vmatprep.subr.mxu0 0.0
    %552 = vmatpush2.msra.mxu0 0.0
    %553 = vmatprep.subr.mxu0 0.0
    %554 = vmatpush2.msra.mxu0 0.0
    %555 = vmatprep.mubr.f32.mxu0 0.0
    %556 = vmatmul.mubr.f32.gmra.mxu0 %v480
    %v557 = vpop.f32.mrf.mxu0
    %v558 = vadd.f32 %v462, %v557
    %v559 = vpop.f32.mrf.mxu0
    %560 = vmatprep.mubr.f32.mxu0 0.0
    %561 = vmatmul.mubr.f32.gmra.mxu0 %v483
    %v562 = vpop.f32.mrf.mxu0
    %v563 = vadd.f32 %v467, %v562
    %v564 = vpop.f32.mrf.mxu0
    %565 = vmatprep.mubr.f32.mxu0 0.0
    %566 = vmatmul.mubr.f32.gmra.mxu0 %v486
    %v567 = vpop.f32.mrf.mxu0
    %v568 = vadd.f32 %v472, %v567
    %v569 = vpop.f32.mrf.mxu0
    %570 = vmatprep.mubr.f32.mxu0 0.0
    %571 = vmatmul.mubr.f32.gmra.mxu0 %v489
    %v572 = vpop.f32.mrf.mxu0
    %v573 = vadd.f32 %v477, %v572
    %v574 = vpop.f32.mrf.mxu0
    %575 = vdwg.mxu0
    %vm576 = vcmp.gt.f32.partialorder %v558, 0.0
    %vm577 = vcmp.gt.f32.partialorder %v563, 0.0
    %vm578 = vcmp.gt.f32.partialorder %v568, 0.0
    %vm579 = vcmp.gt.f32.partialorder %v573, 0.0
    %v580 = vmul.f32 %v558, 1.442695
    %v581 = vpow.pop %v580
    %v582 = vmul.f32 %v563, 1.442695
    %v583 = vpow.pop %v582
    %v584 = vmul.f32 %v568, 1.442695
    %v585 = vpow.pop %v584
    %v586 = vmul.f32 %v573, 1.442695
    %v587 = vpow.pop %v586
    %v588 = vsub.f32 %v581, 1.0
    %v589 = vsub.f32 %v583, 1.0
    %v590 = vsub.f32 %v585, 1.0
    %v591 = vsub.f32 %v587, 1.0
    %v592 = vsel %vm576, %v558, %v588
    %v593 = vsel %vm577, %v563, %v589
    %v594 = vsel %vm578, %v568, %v590
    %v595 = vsel %vm579, %v573, %v591
    %v596 = vld [vmem:[%s9] sm:$0x1]
    %v597 = vld [vmem:[#allocation2] sm:$0x1]
    %599 = vset.pattern.permute.xlu0 0
    %600 = vperm.xlu0 %599, %v597
    %v601 = vpop.permute.xlu0 %600
    %v603 = vlaneseq
    %v604 = vshrl.u32 %v603, 7
    %v605 = vsub.s32 0, %v604
    %v606 = vrot.slane %v601, %v605
    %v608 = vsel %vm333, %v596, 0
    %610 = vmatprep.subr.mxu0 0.0
    %611 = vmatpush1.msra.mxu0 0.0
    %612 = vmatprep.subr.mxu0 0.0
    %613 = vmatpush1.msra.mxu0 0.0
    %614 = vmatprep.subr.mxu0 0.0
    %615 = vmatpush1.msra.mxu0 0.0
    %616 = vmatprep.subr.mxu0 0.0
    %617 = vmatpush1.msra.mxu0 0.0
    %618 = vmatprep.subr.mxu0 0.0
    %619 = vmatpush1.msra.mxu0 0.0
    %620 = vmatprep.subr.mxu0 0.0
    %621 = vmatpush1.msra.mxu0 0.0
    %622 = vmatprep.subr.mxu0 0.0
    %623 = vmatpush1.msra.mxu0 0.0
    %624 = vmatprep.subr.mxu0 0.0
    %625 = vmatpush1.msra.mxu0 0.0
    %626 = vmatprep.subr.mxu0 0.0
    %627 = vmatpush1.msra.mxu0 0.0
    %628 = vmatprep.subr.mxu0 0.0
    %629 = vmatpush1.msra.mxu0 0.0
    %630 = vmatprep.subr.mxu0 0.0
    %631 = vmatpush1.msra.mxu0 0.0
    %632 = vmatprep.subr.mxu0 0.0
    %633 = vmatpush1.msra.mxu0 0.0
    %634 = vmatprep.subr.mxu0 0.0
    %635 = vmatpush1.msra.mxu0 %v595
    %636 = vmatprep.subr.mxu0 0.0
    %637 = vmatpush1.msra.mxu0 %v594
    %638 = vmatprep.subr.mxu0 0.0
    %639 = vmatpush1.msra.mxu0 %v593
    %640 = vmatprep.subr.mxu0 0.0
    %641 = vmatpush1.msra.mxu0 %v592
    %642 = vmatprep.subr.mxu0 0.0
    %643 = vmatpush2.msra.mxu0 0.0
    %644 = vmatprep.subr.mxu0 0.0
    %645 = vmatpush2.msra.mxu0 0.0
    %646 = vmatprep.subr.mxu0 0.0
    %647 = vmatpush2.msra.mxu0 0.0
    %648 = vmatprep.subr.mxu0 0.0
    %649 = vmatpush2.msra.mxu0 0.0
    %650 = vmatprep.subr.mxu0 0.0
    %651 = vmatpush2.msra.mxu0 0.0
    %652 = vmatprep.subr.mxu0 0.0
    %653 = vmatpush2.msra.mxu0 0.0
    %654 = vmatprep.subr.mxu0 0.0
    %655 = vmatpush2.msra.mxu0 0.0
    %656 = vmatprep.subr.mxu0 0.0
    %657 = vmatpush2.msra.mxu0 0.0
    %658 = vmatprep.subr.mxu0 0.0
    %659 = vmatpush2.msra.mxu0 0.0
    %660 = vmatprep.subr.mxu0 0.0
    %661 = vmatpush2.msra.mxu0 0.0
    %662 = vmatprep.subr.mxu0 0.0
    %663 = vmatpush2.msra.mxu0 0.0
    %664 = vmatprep.subr.mxu0 0.0
    %665 = vmatpush2.msra.mxu0 0.0
    %666 = vmatprep.subr.mxu0 0.0
    %667 = vmatpush2.msra.mxu0 0.0
    %668 = vmatprep.subr.mxu0 0.0
    %669 = vmatpush2.msra.mxu0 0.0
    %670 = vmatprep.subr.mxu0 0.0
    %671 = vmatpush2.msra.mxu0 0.0
    %672 = vmatprep.subr.mxu0 0.0
    %673 = vmatpush2.msra.mxu0 0.0
    %674 = vmatprep.mubr.f32.mxu0 0.0
    %675 = vmatmul.mubr.f32.gmra.mxu0 %v608
    %v676 = vpop.f32.mrf.mxu0
    %v677 = vadd.f32 %v606, %v676
    %v678 = vpop.f32.mrf.mxu0
    %679 = vdwg.mxu0
    %680 = vst [vmem:[#allocation3] sm:$0x1] %v677
    // Predicated region
    $region46: #{tpu_custom_call.1} parent=1 // pred_check
      _
    $region47: #{tpu_custom_call.1} parent=1 // pred_check_branch
      %682 = sbr.rel (0) target = $region49
    $region48: #{tpu_custom_call.1} parent=1 // pred_region
      %s684 = ssub.s32 16, 16
      %685 = vsyncadd [#allocation4], %s684
      %s687 = sshll.u32 [#allocation3], 4
      %s688 = int_to_ptr.vmem [resolvable:$true] %s687
      %690 = dma.vmem_to_hbm [thread:$0]  %s688, 16, %s11, [#allocation4]
    $region49: #{tpu_custom_call.1} parent=1 // pred_fallthru
      _
    // Predicated region
    $region50: #{tpu_custom_call.1} parent=1 // pred_check
      _
    $region51: #{tpu_custom_call.1} parent=1 // pred_check_branch
      %692 = sbr.rel (0) target = $region53
    $region52: #{tpu_custom_call.1} parent=1 // pred_region
      %693 = dma.done [#allocation4], 16
    $region53: #{tpu_custom_call.1} parent=1 // pred_fallthru
      _
    %694 = vsyncpa [#allocation4], 1

</llo_original>
